<compile_context>
chip_gen: v7x
topology: tpu7x:2x2x1
jax: 0.10.0
libtpu: 0.0.40
codegen_flags: <defaults>
</compile_context>

<pallas_src>
import functools
import math

import jax
import jax.numpy as jnp
from jax.experimental import pallas as pl
from jax.experimental.pallas import tpu as pltpu


def _round_up(x, m):
    return (x + m - 1) // m * m


def _sublane(dtype):
    """Sublane quantum for row tiling: 8 for f32, 16 for bf16, 32 for 8-bit."""
    bits = jnp.dtype(dtype).itemsize * 8
    return max(8, 256 // bits)


@functools.lru_cache(maxsize=None)
def _vmem_limit_bytes():
    """Generation-aware scoped-VMEM budget (~96 MiB v5e/v6e, ~48 MiB v7x)."""
    try:
        cap = pltpu.get_tpu_info().vmem_capacity_bytes
    except Exception:
        cap = 64 * 1024 * 1024          # conservative fallback
    return int(cap * 3 // 4)


# ---------------------------------------------------------------------------
# Per-head in-projection:  out[h] = x @ W_h + b_h, written head-major so the
# attention kernel can consume it without any wrapper transpose.
# ---------------------------------------------------------------------------
def _proj_kernel(x_ref, w_ref, b_ref, o_ref, *, compute_dtype):
    x = x_ref[...].astype(compute_dtype)                       # (tm, E)
    acc = jnp.dot(x, w_ref[0], preferred_element_type=jnp.float32)
    o_ref[0] = (acc + b_ref[0].astype(jnp.float32)).astype(o_ref.dtype)


def _project_heads(x, w_h, b_h, compute_dtype, *, row_tile=512, vmem_limit):
    """x: (N, E), w_h: (H, E, d), b_h: (H, 1, d) -> (H, N, d) in compute_dtype."""
    N, E = x.shape
    H, _, d = w_h.shape
    sub = _sublane(compute_dtype)
    if N <= row_tile:
        tm = _round_up(N, sub)
        Np = tm
    else:
        tm = row_tile                                  # 512 % 32 == 0
        Np = _round_up(N, row_tile)
    if Np != N:
        x = jnp.pad(x, ((0, Np - N), (0, 0)))

    out = pl.pallas_call(
        functools.partial(_proj_kernel, compute_dtype=compute_dtype),
        out_shape=jax.ShapeDtypeStruct((H, Np, d), compute_dtype),
        grid_spec=pltpu.PrefetchScalarGridSpec(
            num_scalar_prefetch=0,
            # h innermost: the x row-block index is unchanged across h, so it
            # is fetched once per row tile; the per-head weight slab streams.
            grid=(Np // tm, H),
            in_specs=[
                pl.BlockSpec((tm, E), lambda i, h: (i, 0)),
                pl.BlockSpec((1, E, d), lambda i, h: (h, 0, 0)),
                pl.BlockSpec((1, 1, d), lambda i, h: (h, 0, 0)),
            ],
            out_specs=pl.BlockSpec((1, tm, d), lambda i, h: (h, i, 0)),
        ),
        compiler_params=pltpu.CompilerParams(
            dimension_semantics=("parallel", "parallel"),
            vmem_limit_bytes=vmem_limit),
    )(x, w_h, b_h)
    return out if Np == N else out[:, :N, :]


# ---------------------------------------------------------------------------
# Fused attention + output projection.
# Grid (B, q-tiles, H); the head axis is an "arbitrary" reduction: each step
# does one head's softmax(QK^T)V (scale pre-folded into the Q projection) and
# accumulates O_h @ W_f[h] into an f32 scratch; the last head adds the fused
# bias and stores one lane-dense (tq, E) block of the final output.
# ---------------------------------------------------------------------------
def _attn_kernel(q_ref, k_ref, v_ref, w_ref, b_ref, o_ref, acc_ref, *,
                 compute_dtype, w_resident):
    h = pl.program_id(2)

    @pl.when(h == 0)
    def _():
        acc_ref[...] = jnp.zeros_like(acc_ref)

    q = q_ref[0, 0]                                     # (tq, d)
    k = k_ref[0, 0]                                     # (Sk, d)
    v = v_ref[0, 0]                                     # (Sk, d)

    # scores: contract the head dim directly (no explicit transpose needed)
    s = jax.lax.dot_general(q, k, (((1,), (1,)), ((), ())),
                            preferred_element_type=jnp.float32)   # (tq, Sk)
    s = s - jnp.max(s, axis=-1, keepdims=True)
    p = jnp.exp(s)
    l = jnp.sum(p, axis=-1, keepdims=True)
    o = jnp.dot(p.astype(compute_dtype), v,
                preferred_element_type=jnp.float32)               # (tq, d)
    o = o * pl.reciprocal(l, approx=True)     # EUP slot, once per row

    # fused (out_proj . Linear): accumulate this head's contribution
    w_h = w_ref[h] if w_resident else w_ref[0]                    # (d, E)
    acc_ref[...] += jnp.dot(o.astype(compute_dtype), w_h,
                            preferred_element_type=jnp.float32)   # (tq, E)

    @pl.when(h == pl.num_programs(2) - 1)
    def _():
        o_ref[0] = (acc_ref[...] + b_ref[...].astype(jnp.float32)
                    ).astype(o_ref.dtype)


# ---------------------------------------------------------------------------
# One-time weight prep (call ONCE, outside the per-step jit).
# ---------------------------------------------------------------------------
def prepare_params(params, num_heads, compute_dtype=jnp.float32):
    wq, wk, wv, bq, bk, bv, wo, bo, wl, bl = params
    E = wq.shape[0]
    H = num_heads
    assert E % H == 0
    d = E // H
    scale = 1.0 / math.sqrt(d)

    def per_head_w(w, s=1.0):
        wt = (w.T * s).astype(compute_dtype)             # (E_in, E_out)
        return wt.reshape(E, H, d).transpose(1, 0, 2)    # (H, E_in, d)

    def per_head_b(b, s=1.0):
        return (b * s).astype(jnp.float32).reshape(H, d)[:, None, :]  # (H,1,d)

    wq_h = per_head_w(wq, scale)        # softmax scale folded into Q proj
    bq_h = per_head_b(bq, scale)
    wk_h, bk_h = per_head_w(wk), per_head_b(bk)
    wv_h, bv_h = per_head_w(wv), per_head_b(bv)

    # Fuse MHA out_proj with trailing Linear:  y = (a @ wo.T + bo) @ wl.T + bl
    w_f = (wo.T @ wl.T).astype(compute_dtype).reshape(H, d, E)  # per-head rows
    b_f = (bo @ wl.T + bl).astype(jnp.float32)                  # (1, E)
    return (wq_h, bq_h, wk_h, bk_h, wv_h, bv_h, w_f, b_f)


# ---------------------------------------------------------------------------
# Full CrossAttention forward (batch-first q/k/v of shape (B, S, E)).
# ---------------------------------------------------------------------------
@functools.partial(jax.jit, static_argnames=("num_heads",))
def cross_attention(q, k, v, prep, *, num_heads):
    wq_h, bq_h, wk_h, bk_h, wv_h, bv_h, w_f, b_f = prep
    B, Sq, E = q.shape
    _, Sk, _ = k.shape
    H = num_heads
    d = E // H
    out_dtype = q.dtype
    compute_dtype = w_f.dtype              # bf16 -> full-rate MXU, f32 -> exact
    vmem_limit = _vmem_limit_bytes()
    sub = _sublane(compute_dtype)

    # --- query tiling (dtype-aware sublane rounding; pad queries only) -------
    q_tile = 256
    if Sq <= q_tile:
        tq = _round_up(Sq, sub)
        Sq_p = tq
    else:
        tq = q_tile
        Sq_p = _round_up(Sq, q_tile)
    if Sq_p != Sq:
        q = jnp.pad(q, ((0, 0), (0, Sq_p - Sq), (0, 0)))

    # --- in-projections written head-major (no wrapper transposes) -----------
    Qh = _project_heads(q.reshape(B * Sq_p, E), wq_h, bq_h, compute_dtype,
                        vmem_limit=vmem_limit)
    Kh = _project_heads(k.reshape(B * Sk, E), wk_h, bk_h, compute_dtype,
                        vmem_limit=vmem_limit)
    Vh = _project_heads(v.reshape(B * Sk, E), wv_h, bv_h, compute_dtype,
                        vmem_limit=vmem_limit)
    Qh = Qh.reshape(H, B, Sq_p, d)          # free reshapes (no data movement)
    Kh = Kh.reshape(H, B, Sk, d)
    Vh = Vh.reshape(H, B, Sk, d)

    # Keep the fused output weight VMEM-resident only when it fits comfortably
    # (v7x 64 MiB safety); otherwise stream one (d, E) head-slab per step.
    w_bytes = w_f.size * jnp.dtype(w_f.dtype).itemsize
    w_resident = 2 * w_bytes <= vmem_limit // 4
    if w_resident:
        w_spec = pl.BlockSpec((H, d, E), lambda b, i, h: (0, 0, 0))
    else:
        w_spec = pl.BlockSpec((1, d, E), lambda b, i, h: (h, 0, 0))

    out = pl.pallas_call(
        functools.partial(_attn_kernel, compute_dtype=compute_dtype,
                          w_resident=w_resident),
        out_shape=jax.ShapeDtypeStruct((B, Sq_p, E), out_dtype),
        grid_spec=pltpu.PrefetchScalarGridSpec(
            num_scalar_prefetch=0,
            grid=(B, Sq_p // tq, H),
            in_specs=[
                pl.BlockSpec((1, 1, tq, d), lambda b, i, h: (h, b, i, 0)),
                pl.BlockSpec((1, 1, Sk, d), lambda b, i, h: (h, b, 0, 0)),
                pl.BlockSpec((1, 1, Sk, d), lambda b, i, h: (h, b, 0, 0)),
                w_spec,
                pl.BlockSpec((1, E), lambda b, i, h: (0, 0)),
            ],
            # Lane-dense output block: last dim is the full E, constant across
            # the head (reduction) axis -> accumulator pattern.
            out_specs=pl.BlockSpec((1, tq, E), lambda b, i, h: (b, i, 0)),
            scratch_shapes=[pltpu.VMEM((tq, E), jnp.float32)],
        ),
        compiler_params=pltpu.CompilerParams(
            dimension_semantics=("parallel", "parallel", "arbitrary"),
            vmem_limit_bytes=vmem_limit),
    )(Qh, Kh, Vh, w_f, b_f)

    return out if Sq_p == Sq else out[:, :Sq, :]


# ---------------------------------------------------------------------------
# Pure-JAX reference mirroring nn.MultiheadAttention + nn.Linear.
# ---------------------------------------------------------------------------
def cross_attention_ref(q, k, v, params, *, num_heads):
    wq, wk, wv, bq, bk, bv, wo, bo, wl, bl = params
    B, Sq, E = q.shape
    Sk = k.shape[1]
    d = E // num_heads

    Q = q @ wq.T + bq
    K = k @ wk.T + bk
    V = v @ wv.T + bv

    Qh = Q.reshape(B, Sq, num_heads, d).transpose(0, 2, 1, 3)
    Kh = K.reshape(B, Sk, num_heads, d).transpose(0, 2, 1, 3)
    Vh = V.reshape(B, Sk, num_heads, d).transpose(0, 2, 1, 3)

    s = jnp.einsum("bhqd,bhkd->bhqk", Qh, Kh) / math.sqrt(d)
    p = jax.nn.softmax(s, axis=-1)
    o = jnp.einsum("bhqk,bhkd->bhqd", p, Vh)
    o = o.transpose(0, 2, 1, 3).reshape(B, Sq, E)

    o = o @ wo.T + bo
    return o @ wl.T + bl


def make_params(key, hidden_size):
    E = hidden_size
    keys = jax.random.split(key, 10)
    scale = 0.05
    wq = scale * jax.random.normal(keys[0], (E, E), jnp.float32)
    wk = scale * jax.random.normal(keys[1], (E, E), jnp.float32)
    wv = scale * jax.random.normal(keys[2], (E, E), jnp.float32)
    bq = scale * jax.random.normal(keys[3], (1, E), jnp.float32)
    bk = scale * jax.random.normal(keys[4], (1, E), jnp.float32)
    bv = scale * jax.random.normal(keys[5], (1, E), jnp.float32)
    wo = scale * jax.random.normal(keys[6], (E, E), jnp.float32)
    bo = scale * jax.random.normal(keys[7], (1, E), jnp.float32)
    wl = scale * jax.random.normal(keys[8], (E, E), jnp.float32)
    bl = scale * jax.random.normal(keys[9], (1, E), jnp.float32)
    return (wq, wk, wv, bq, bk, bv, wo, bo, wl, bl)


if __name__ == "__main__":
    B, Sq, Sk = 2, 8, 8
    hidden_size, num_heads = 32, 4

    root = jax.random.PRNGKey(0)
    kq, kk, kv, kp = jax.random.split(root, 4)
    q = jax.random.normal(kq, (B, Sq, hidden_size), jnp.float32)
    k = jax.random.normal(kk, (B, Sk, hidden_size), jnp.float32)
    v = jax.random.normal(kv, (B, Sk, hidden_size), jnp.float32)
    params = make_params(kp, hidden_size)
    ref = cross_attention_ref(q, k, v, params, num_heads=num_heads)

    # f32 compute path (matches the reference closely).
    prep32 = prepare_params(params, num_heads, compute_dtype=jnp.float32)
    out32 = jax.block_until_ready(
        cross_attention(q, k, v, prep32, num_heads=num_heads))
    assert out32.shape == (B, Sq, hidden_size)
    assert jnp.allclose(out32, ref, atol=2e-3, rtol=2e-3), "f32 mismatch vs ref"

    # bf16 MXU path (per perf review): bf16 operands, f32 accumulation.
    prep16 = prepare_params(params, num_heads, compute_dtype=jnp.bfloat16)
    out16 = jax.block_until_ready(
        cross_attention(q, k, v, prep16, num_heads=num_heads))
    assert out16.shape == (B, Sq, hidden_size)
    assert jnp.allclose(out16.astype(jnp.float32), ref,
                        atol=5e-2, rtol=5e-2), "bf16 mismatch vs ref"

    print("KERNEL_OK")
</pallas_src>

<mosaic_0001>
module attributes {stable_mosaic.version = 11 : i64} {
  func.func @_proj_kernel(%arg0: i32, %arg1: i32, %arg2: memref<16x32xf32, #tpu.memory_space<vmem>>, %arg3: memref<1x32x8xf32, #tpu.memory_space<vmem>>, %arg4: memref<1x1x8xf32, #tpu.memory_space<vmem>>, %arg5: memref<1x16x8xf32, #tpu.memory_space<vmem>>) attributes {dimension_semantics = [#tpu.dimension_semantics<parallel>, #tpu.dimension_semantics<parallel>], iteration_bounds = array<i64: 1, 4>, scalar_prefetch = 0 : i64, scratch_operands = 0 : i64, tpu.core_type = #tpu.core_type<tc>, window_params = [{transform_indices = @transform_0, window_bounds = array<i64: 16, 32>}, {transform_indices = @transform_1, window_bounds = array<i64: 1, 32, 8>}, {transform_indices = @transform_2, window_bounds = array<i64: 1, 1, 8>}, {transform_indices = @transform_3, window_bounds = array<i64: 1, 16, 8>}]} {
    %c0 = arith.constant 0 : index
    %c0_0 = arith.constant 0 : index
    %0 = vector.load %arg2[%c0, %c0_0] : memref<16x32xf32, #tpu.memory_space<vmem>>, vector<16x32xf32>
    %c0_1 = arith.constant 0 : index
    %c0_2 = arith.constant 0 : index
    %c0_3 = arith.constant 0 : index
    %1 = vector.load %arg3[%c0_1, %c0_2, %c0_3] : memref<1x32x8xf32, #tpu.memory_space<vmem>>, vector<1x32x8xf32>
    %2 = vector.shape_cast %1 : vector<1x32x8xf32> to vector<32x8xf32>
    %cst = arith.constant dense<0.000000e+00> : vector<16x8xf32>
    %3 = tpu.matmul %0, %2, %cst {dimension_numbers = #tpu.dot_dimension_numbers<[1], [0], [0], [1], [0, 0, 1, 1], [], []>} : vector<16x32xf32>, vector<32x8xf32>, vector<16x8xf32> -> vector<16x8xf32>
    %c0_4 = arith.constant 0 : index
    %c0_5 = arith.constant 0 : index
    %c0_6 = arith.constant 0 : index
    %4 = vector.load %arg4[%c0_4, %c0_5, %c0_6] : memref<1x1x8xf32, #tpu.memory_space<vmem>>, vector<1x1x8xf32>
    %5 = vector.shape_cast %4 : vector<1x1x8xf32> to vector<1x8xf32>
    %6 = vector.broadcast %5 : vector<1x8xf32> to vector<16x8xf32>
    %7 = arith.addf %3, %6 : vector<16x8xf32>
    %c0_7 = arith.constant 0 : index
    %c0_8 = arith.constant 0 : index
    %c0_9 = arith.constant 0 : index
    %8 = vector.load %arg5[%c0_7, %c0_8, %c0_9] : memref<1x16x8xf32, #tpu.memory_space<vmem>>, vector<1x16x8xf32>
    %9 = vector.shape_cast %8 : vector<1x16x8xf32> to vector<16x8xf32>
    %10 = vector.shape_cast %7 : vector<16x8xf32> to vector<1x16x8xf32>
    tpu.vector_store %arg5[%c0_7, %c0_8, %c0_9], %10 {strides = array<i32>} : memref<1x16x8xf32, #tpu.memory_space<vmem>>, vector<1x16x8xf32>,
    return
  }
  func.func @transform_0(%arg0: i32, %arg1: i32) -> (i32, i32) {
    %c0_i32 = arith.constant 0 : i32
    %c0_i32_0 = arith.constant 0 : i32
    return %arg0, %c0_i32 : i32, i32
  }
  func.func @transform_1(%arg0: i32, %arg1: i32) -> (i32, i32, i32) {
    %c0_i32 = arith.constant 0 : i32
    %c0_i32_0 = arith.constant 0 : i32
    %c0_i32_1 = arith.constant 0 : i32
    return %arg1, %c0_i32, %c0_i32_0 : i32, i32, i32
  }
  func.func @transform_2(%arg0: i32, %arg1: i32) -> (i32, i32, i32) {
    %c0_i32 = arith.constant 0 : i32
    %c0_i32_0 = arith.constant 0 : i32
    %c0_i32_1 = arith.constant 0 : i32
    return %arg1, %c0_i32, %c0_i32_0 : i32, i32, i32
  }
  func.func @transform_3(%arg0: i32, %arg1: i32) -> (i32, i32, i32) {
    %c0_i32 = arith.constant 0 : i32
    %c0_i32_0 = arith.constant 0 : i32
    return %arg1, %arg0, %c0_i32 : i32, i32, i32
  }
}

module attributes {stable_mosaic.version = 11 : i64} {
  func.func @_attn_kernel(%arg0: i32, %arg1: i32, %arg2: i32, %arg3: memref<1x1x8x8xf32, #tpu.memory_space<vmem>>, %arg4: memref<1x1x8x8xf32, #tpu.memory_space<vmem>>, %arg5: memref<1x1x8x8xf32, #tpu.memory_space<vmem>>, %arg6: memref<4x8x32xf32, #tpu.memory_space<vmem>>, %arg7: memref<1x32xf32, #tpu.memory_space<vmem>>, %arg8: memref<1x8x32xf32, #tpu.memory_space<vmem>>, %arg9: memref<8x32xf32, #tpu.memory_space<vmem>>) attributes {dimension_semantics = [#tpu.dimension_semantics<parallel>, #tpu.dimension_semantics<parallel>, #tpu.dimension_semantics<arbitrary>], iteration_bounds = array<i64: 2, 1, 4>, scalar_prefetch = 0 : i64, scratch_operands = 1 : i64, tpu.core_type = #tpu.core_type<tc>, window_params = [{transform_indices = @transform_0, window_bounds = array<i64: 1, 1, 8, 8>}, {transform_indices = @transform_1, window_bounds = array<i64: 1, 1, 8, 8>}, {transform_indices = @transform_2, window_bounds = array<i64: 1, 1, 8, 8>}, {pipeline_mode = #tpu.pipeline_mode<synchronous>, transform_indices = @transform_3, window_bounds = array<i64: 4, 8, 32>}, {pipeline_mode = #tpu.pipeline_mode<synchronous>, transform_indices = @transform_4, window_bounds = array<i64: 1, 32>}, {transform_indices = @transform_5, window_bounds = array<i64: 1, 8, 32>}]} {
    %c0_i32 = arith.constant 0 : i32
    %0 = arith.cmpi eq, %arg2, %c0_i32 : i32
    %1 = arith.extui %0 : i1 to i32
    %c0_i32_0 = arith.constant 0 : i32
    %2 = arith.cmpi ne, %1, %c0_i32_0 : i32
    scf.if %2 {
      %cst_23 = arith.constant 0.000000e+00 : f32
      %31 = vector.broadcast %cst_23 : f32 to vector<8x32xf32>
      %c0_24 = arith.constant 0 : index
      %c0_25 = arith.constant 0 : index
      %32 = vector.load %arg9[%c0_24, %c0_25] : memref<8x32xf32, #tpu.memory_space<vmem>>, vector<8x32xf32>
      tpu.vector_store %arg9[%c0_24, %c0_25], %31 {strides = array<i32>} : memref<8x32xf32, #tpu.memory_space<vmem>>, vector<8x32xf32>,
    } else {
    }
    %c0 = arith.constant 0 : index
    %c0_1 = arith.constant 0 : index
    %c0_2 = arith.constant 0 : index
    %c0_3 = arith.constant 0 : index
    %3 = vector.load %arg3[%c0, %c0_1, %c0_2, %c0_3] : memref<1x1x8x8xf32, #tpu.memory_space<vmem>>, vector<1x1x8x8xf32>
    %4 = vector.shape_cast %3 : vector<1x1x8x8xf32> to vector<8x8xf32>
    %c0_4 = arith.constant 0 : index
    %c0_5 = arith.constant 0 : index
    %c0_6 = arith.constant 0 : index
    %c0_7 = arith.constant 0 : index
    %5 = vector.load %arg4[%c0_4, %c0_5, %c0_6, %c0_7] : memref<1x1x8x8xf32, #tpu.memory_space<vmem>>, vector<1x1x8x8xf32>
    %6 = vector.shape_cast %5 : vector<1x1x8x8xf32> to vector<8x8xf32>
    %c0_8 = arith.constant 0 : index
    %c0_9 = arith.constant 0 : index
    %c0_10 = arith.constant 0 : index
    %c0_11 = arith.constant 0 : index
    %7 = vector.load %arg5[%c0_8, %c0_9, %c0_10, %c0_11] : memref<1x1x8x8xf32, #tpu.memory_space<vmem>>, vector<1x1x8x8xf32>
    %8 = vector.shape_cast %7 : vector<1x1x8x8xf32> to vector<8x8xf32>
    %cst = arith.constant dense<0.000000e+00> : vector<8x8xf32>
    %9 = tpu.matmul %4, %6, %cst {dimension_numbers = #tpu.dot_dimension_numbers<[1], [1], [0], [0], [0, 0, 1, 0], [], []>} : vector<8x8xf32>, vector<8x8xf32>, vector<8x8xf32> -> vector<8x8xf32>
    %cst_12 = arith.constant dense<0xFF800000> : vector<8xf32>
    %10 = vector.multi_reduction <maximumf>, %9, %cst_12 [1] : vector<8x8xf32> to vector<8xf32>
    %11 = vector.shape_cast %10 : vector<8xf32> to vector<8x1xf32>
    %12 = vector.broadcast %11 : vector<8x1xf32> to vector<8x8xf32>
    %13 = arith.subf %9, %12 : vector<8x8xf32>
    %14 = math.exp %13 : vector<8x8xf32>
    %cst_13 = arith.constant dense<0.000000e+00> : vector<8xf32>
    %15 = vector.multi_reduction <add>, %14, %cst_13 [1] : vector<8x8xf32> to vector<8xf32>
    %16 = vector.shape_cast %15 : vector<8xf32> to vector<8x1xf32>
    %cst_14 = arith.constant dense<0.000000e+00> : vector<8x8xf32>
    %17 = tpu.matmul %14, %8, %cst_14 {dimension_numbers = #tpu.dot_dimension_numbers<[1], [0], [0], [1], [0, 0, 1, 1], [], []>} : vector<8x8xf32>, vector<8x8xf32>, vector<8x8xf32> -> vector<8x8xf32>
    %18 = tpu.reciprocal %16 {approx = true} : vector<8x1xf32> -> vector<8x1xf32>
    %19 = vector.broadcast %18 : vector<8x1xf32> to vector<8x8xf32>
    %20 = arith.mulf %17, %19 : vector<8x8xf32>
    %21 = arith.index_cast %arg2 : i32 to index
    %c0_15 = arith.constant 0 : index
    %c0_16 = arith.constant 0 : index
    %22 = vector.load %arg6[%21, %c0_15, %c0_16] : memref<4x8x32xf32, #tpu.memory_space<vmem>>, vector<1x8x32xf32>
    %23 = vector.shape_cast %22 : vector<1x8x32xf32> to vector<8x32xf32>
    %c0_17 = arith.constant 0 : index
    %c0_18 = arith.constant 0 : index
    %24 = vector.load %arg9[%c0_17, %c0_18] : memref<8x32xf32, #tpu.memory_space<vmem>>, vector<8x32xf32>
    %cst_19 = arith.constant dense<0.000000e+00> : vector<8x32xf32>
    %25 = tpu.matmul %20, %23, %cst_19 {dimension_numbers = #tpu.dot_dimension_numbers<[1], [0], [0], [1], [0, 0, 1, 1], [], []>} : vector<8x8xf32>, vector<8x32xf32>, vector<8x32xf32> -> vector<8x32xf32>
    %26 = arith.addf %24, %25 : vector<8x32xf32>
    %c0_20 = arith.constant 0 : index
    %c0_21 = arith.constant 0 : index
    %27 = vector.load %arg9[%c0_20, %c0_21] : memref<8x32xf32, #tpu.memory_space<vmem>>, vector<8x32xf32>
    tpu.vector_store %arg9[%c0_20, %c0_21], %26 {strides = array<i32>} : memref<8x32xf32, #tpu.memory_space<vmem>>, vector<8x32xf32>,
    %c3_i32 = arith.constant 3 : i32
    %28 = arith.cmpi eq, %arg2, %c3_i32 : i32
    %29 = arith.extui %28 : i1 to i32
    %c0_i32_22 = arith.constant 0 : i32
    %30 = arith.cmpi ne, %29, %c0_i32_22 : i32
    scf.if %30 {
      %c0_23 = arith.constant 0 : index
      %c0_24 = arith.constant 0 : index
      %31 = vector.load %arg9[%c0_23, %c0_24] : memref<8x32xf32, #tpu.memory_space<vmem>>, vector<8x32xf32>
      %c0_25 = arith.constant 0 : index
      %c0_26 = arith.constant 0 : index
      %32 = vector.load %arg7[%c0_25, %c0_26] : memref<1x32xf32, #tpu.memory_space<vmem>>, vector<1x32xf32>
      %33 = vector.broadcast %32 : vector<1x32xf32> to vector<8x32xf32>
      %34 = arith.addf %31, %33 : vector<8x32xf32>
      %c0_27 = arith.constant 0 : index
      %c0_28 = arith.constant 0 : index
      %c0_29 = arith.constant 0 : index
      %35 = vector.load %arg8[%c0_27, %c0_28, %c0_29] : memref<1x8x32xf32, #tpu.memory_space<vmem>>, vector<1x8x32xf32>
      %36 = vector.shape_cast %35 : vector<1x8x32xf32> to vector<8x32xf32>
      %37 = vector.shape_cast %34 : vector<8x32xf32> to vector<1x8x32xf32>
      tpu.vector_store %arg8[%c0_27, %c0_28, %c0_29], %37 {strides = array<i32>} : memref<1x8x32xf32, #tpu.memory_space<vmem>>, vector<1x8x32xf32>,
    } else {
    }
    return
  }
  func.func @transform_0(%arg0: i32, %arg1: i32, %arg2: i32) -> (i32, i32, i32, i32) {
    %c0_i32 = arith.constant 0 : i32
    %c0_i32_0 = arith.constant 0 : i32
    return %arg2, %arg0, %arg1, %c0_i32 : i32, i32, i32, i32
  }
  func.func @transform_1(%arg0: i32, %arg1: i32, %arg2: i32) -> (i32, i32, i32, i32) {
    %c0_i32 = arith.constant 0 : i32
    %c0_i32_0 = arith.constant 0 : i32
    %c0_i32_1 = arith.constant 0 : i32
    return %arg2, %arg0, %c0_i32, %c0_i32_0 : i32, i32, i32, i32
  }
  func.func @transform_2(%arg0: i32, %arg1: i32, %arg2: i32) -> (i32, i32, i32, i32) {
    %c0_i32 = arith.constant 0 : i32
    %c0_i32_0 = arith.constant 0 : i32
    %c0_i32_1 = arith.constant 0 : i32
    return %arg2, %arg0, %c0_i32, %c0_i32_0 : i32, i32, i32, i32
  }
  func.func @transform_3(%arg0: i32, %arg1: i32, %arg2: i32) -> (i32, i32, i32) {
    %c0_i32 = arith.constant 0 : i32
    %c0_i32_0 = arith.constant 0 : i32
    %c0_i32_1 = arith.constant 0 : i32
    %c0_i32_2 = arith.constant 0 : i32
    return %c0_i32, %c0_i32_0, %c0_i32_1 : i32, i32, i32
  }
  func.func @transform_4(%arg0: i32, %arg1: i32, %arg2: i32) -> (i32, i32) {
    %c0_i32 = arith.constant 0 : i32
    %c0_i32_0 = arith.constant 0 : i32
    %c0_i32_1 = arith.constant 0 : i32
    return %c0_i32, %c0_i32_0 : i32, i32
  }
  func.func @transform_5(%arg0: i32, %arg1: i32, %arg2: i32) -> (i32, i32, i32) {
    %c0_i32 = arith.constant 0 : i32
    %c0_i32_0 = arith.constant 0 : i32
    return %arg0, %arg1, %c0_i32 : i32, i32, i32
  }
}

</mosaic_0001>

<llo_original>
// kernel: cross_attention.4
$region0: #{cross_attention.4}
  #allocation0 [shape = 'u32[]', space=smem, size = 0x4, offset = 0x4, fixed_abs, tag = 'smem constant byte address 0x4 - core index']
  #allocation1 [shape = 'u32[144,128]{1,0:T(1,128)}', space=vmem, size = 0x12000, scoped, tag = 'internal scratch']
  %s0 = inlined_call_operand.vmem [shape: f32[16,32], index: 0, kind: input, shape index: {}]
  %s1 = inlined_call_operand.vmem [shape: f32[4,32,8], index: 1, kind: input, shape index: {}]
  %s2 = inlined_call_operand.vmem [shape: f32[4,1,8], index: 2, kind: input, shape index: {}]
  %s3 = inlined_call_operand.vmem [shape: f32[4,16,8], index: 3, kind: output, shape index: {}]
  %s4 = sld [smem:[#allocation0]]
  $region45: #{cross_attention.4} parent=0
    _
  %s6 = ssub.s32 1, %s4
  %s7 = scalar_select 0, %s6, %s4
  loop: start=0, step=1, limit=6
  $region2: #{cross_attention.4} parent=0 // loop_pre_header
    _
  $region3: #{cross_attention.4} parent=0 // loop_header
    %s9 = sphi 0, %s13
    %p10 = scmp.ge.s32.totalorder %s9, 6
    %s16 = sphi 0, %s28
    %s17 = sphi 0, %s24
    %s18 = sphi 0, %s16
    %s19 = sphi 0, %s17
    %s20 = sphi 0, %s18
    %s21 = sphi 0, %s19
    %s31 = sphi 0, %s33
    %s34 = sphi 0, %s31
    %s35 = sphi 0, %s34
    %s51 = sphi 0, %s35
    %s57 = sphi 0, %s59
    %s60 = sphi 0, %s57
    %s61 = sphi 0, %s60
    %s77 = sphi 0, %s61
    %s83 = sphi 0, %s85
    %s86 = sphi 0, %s83
    %s87 = sphi 0, %s86
    %s103 = sphi 0, %s87
    %s111 = sphi 0, %s113
    %s114 = sphi 0, %s111
    %s115 = sphi 0, %s114
    %s131 = sphi 0, %s115
  $region4: #{cross_attention.4} parent=0 // loop_header_branch
    %12 = sbr.rel (%p10) target = $region8
  $region5: #{cross_attention.4} parent=0 // loop_body
    %s14 = ssub.s32 %s9, 1
    %s15 = ssub.s32 %s9, 2
    %s22 = sadd.s32 1, %s17
    %p23 = scmp.ge.s32.totalorder %s22, 4
    %s24 = scalar_select %p23, 0, %s22
    %s25 = sadd.s32 1, %s16
    %s26 = scalar_select %p23, %s25, %s16
    %p27 = scmp.ge.s32.totalorder %s26, 1
    %s28 = scalar_select %p27, 0, %s26
    %s29 = ssub.s32 %s16, %s28
    %p30 = scmp.eq.s32.totalorder %s29, 0
    %s32 = sadd.s32 %s31, 1
    %s33 = scalar_select %p30, %s31, %s32
    %p36 = pneg %p30
    %p37 = scmp.eq.s32.totalorder %s9, 3
    %p38 = por %p36, %p37
    %p39 = scmp.ne.s32.totalorder %s31, %s34
    %p40 = scmp.eq.s32.totalorder %s9, 0
    %p41 = por %p39, %p40
    %p42 = scmp.ne.s32.totalorder %s31, %s34
    %p43 = scmp.eq.s32.totalorder %s14, 3
    %p44 = por %p42, %p43
    %p45 = scmp.ne.s32.totalorder %s34, %s35
    %p46 = scmp.eq.s32.totalorder %s14, 0
    %p47 = por %p45, %p46
    %p48 = scmp.ne.s32.totalorder %s34, %s35
    %p49 = scmp.eq.s32.totalorder %s15, 3
    %p50 = por %p48, %p49
    %p52 = scmp.ne.s32.totalorder %s35, %s51
    %p53 = scmp.eq.s32.totalorder %s15, 0
    %p54 = por %p52, %p53
    %s55 = ssub.s32 %s17, %s24
    %p56 = scmp.eq.s32.totalorder %s55, 0
    %s58 = sadd.s32 %s57, 1
    %s59 = scalar_select %p56, %s57, %s58
    %p62 = pneg %p56
    %p63 = scmp.eq.s32.totalorder %s9, 3
    %p64 = por %p62, %p63
    %p65 = scmp.ne.s32.totalorder %s57, %s60
    %p66 = scmp.eq.s32.totalorder %s9, 0
    %p67 = por %p65, %p66
    %p68 = scmp.ne.s32.totalorder %s57, %s60
    %p69 = scmp.eq.s32.totalorder %s14, 3
    %p70 = por %p68, %p69
    %p71 = scmp.ne.s32.totalorder %s60, %s61
    %p72 = scmp.eq.s32.totalorder %s14, 0
    %p73 = por %p71, %p72
    %p74 = scmp.ne.s32.totalorder %s60, %s61
    %p75 = scmp.eq.s32.totalorder %s15, 3
    %p76 = por %p74, %p75
    %p78 = scmp.ne.s32.totalorder %s61, %s77
    %p79 = scmp.eq.s32.totalorder %s15, 0
    %p80 = por %p78, %p79
    %s81 = ssub.s32 %s17, %s24
    %p82 = scmp.eq.s32.totalorder %s81, 0
    %s84 = sadd.s32 %s83, 1
    %s85 = scalar_select %p82, %s83, %s84
    %p88 = pneg %p82
    %p89 = scmp.eq.s32.totalorder %s9, 3
    %p90 = por %p88, %p89
    %p91 = scmp.ne.s32.totalorder %s83, %s86
    %p92 = scmp.eq.s32.totalorder %s9, 0
    %p93 = por %p91, %p92
    %p94 = scmp.ne.s32.totalorder %s83, %s86
    %p95 = scmp.eq.s32.totalorder %s14, 3
    %p96 = por %p94, %p95
    %p97 = scmp.ne.s32.totalorder %s86, %s87
    %p98 = scmp.eq.s32.totalorder %s14, 0
    %p99 = por %p97, %p98
    %p100 = scmp.ne.s32.totalorder %s86, %s87
    %p101 = scmp.eq.s32.totalorder %s15, 3
    %p102 = por %p100, %p101
    %p104 = scmp.ne.s32.totalorder %s87, %s103
    %p105 = scmp.eq.s32.totalorder %s15, 0
    %p106 = por %p104, %p105
    %s107 = ssub.s32 %s17, %s24
    %s108 = ssub.s32 %s16, %s28
    %s109 = sor.u32 %s107, %s108
    %p110 = scmp.eq.s32.totalorder %s109, 0
    %s112 = sadd.s32 %s111, 1
    %s113 = scalar_select %p110, %s111, %s112
    %p116 = pneg %p110
    %p117 = scmp.eq.s32.totalorder %s9, 3
    %p118 = por %p116, %p117
    %p119 = scmp.ne.s32.totalorder %s111, %s114
    %p120 = scmp.eq.s32.totalorder %s9, 0
    %p121 = por %p119, %p120
    %p122 = scmp.ne.s32.totalorder %s111, %s114
    %p123 = scmp.eq.s32.totalorder %s14, 3
    %p124 = por %p122, %p123
    %p125 = scmp.ne.s32.totalorder %s114, %s115
    %p126 = scmp.eq.s32.totalorder %s14, 0
    %p127 = por %p125, %p126
    %p128 = scmp.ne.s32.totalorder %s114, %s115
    %p129 = scmp.eq.s32.totalorder %s15, 3
    %p130 = por %p128, %p129
    %p132 = scmp.ne.s32.totalorder %s115, %s131
    %p133 = scmp.eq.s32.totalorder %s15, 0
    %p134 = por %p132, %p133
    %p135 = scmp.le.s32.totalorder 1, %s9
    %p136 = scmp.lt.s32.totalorder %s9, 5
    %p137 = pnand %p135, %p136
    %p138 = pneg %p137
    // Predicated region
    $region9: #{cross_attention.4} parent=5 // pred_check
      _
    $region10: #{cross_attention.4} parent=5 // pred_check_branch
      %140 = sbr.rel (%p137) target = $region12
    $region11: #{cross_attention.4} parent=5 // pred_region
      %s141 = ssub.s32 %s9, 1
      // Predicated region
      $region13: #{cross_attention.4} parent=11 // pred_check
        %p142 = pneg %p47
      $region14: #{cross_attention.4} parent=11 // pred_check_branch
        %144 = sbr.rel (%p142) target = $region16
      $region15: #{cross_attention.4} parent=11 // pred_region
        %s145 = smul.u32 2, %s18
        %p146 = scmp.lt.s32.totalorder %s145, 1
        %s147 = scalar_select %p146, %s145, 1
        %s148 = smul.addr %s147, 8
        %s149 = scalar_lea.vmem %s0, %s148
        %s150 = smul.u32 2, %s18
      $region16: #{cross_attention.4} parent=11 // pred_fallthru
        _
    $region12: #{cross_attention.4} parent=5 // pred_fallthru
      _
    %p151 = scmp.lt.s32.totalorder %s9, 4
    // Predicated region
    $region17: #{cross_attention.4} parent=5 // pred_check
      %p152 = pneg %p151
    $region18: #{cross_attention.4} parent=5 // pred_check_branch
      %154 = sbr.rel (%p152) target = $region20
    $region19: #{cross_attention.4} parent=5 // pred_region
      // Predicated region
      $region21: #{cross_attention.4} parent=19 // pred_check
        %p155 = pneg %p67
      $region22: #{cross_attention.4} parent=19 // pred_check_branch
        %157 = sbr.rel (%p155) target = $region24
      $region23: #{cross_attention.4} parent=19 // pred_region
        %p158 = scmp.lt.s32.totalorder %s17, 3
        %s159 = scalar_select %p158, %s17, 3
        %s160 = smul.addr %s159, 4
        %s161 = smul.addr %s160, 8
        %s162 = scalar_lea.vmem %s1, %s161
      $region24: #{cross_attention.4} parent=19 // pred_fallthru
        _
      // Predicated region
      $region25: #{cross_attention.4} parent=19 // pred_check
        %p163 = pneg %p93
      $region26: #{cross_attention.4} parent=19 // pred_check_branch
        %165 = sbr.rel (%p163) target = $region28
      $region27: #{cross_attention.4} parent=19 // pred_region
        %p166 = scmp.lt.s32.totalorder %s17, 3
        %s167 = scalar_select %p166, %s17, 3
        %s168 = scalar_lea.vmem %s2, %s167
      $region28: #{cross_attention.4} parent=19 // pred_fallthru
        _
    $region20: #{cross_attention.4} parent=5 // pred_fallthru
      _
    %p169 = scmp.le.s32.totalorder 1, %s9
    %p170 = scmp.lt.s32.totalorder %s9, 5
    %p171 = pnand %p169, %p170
    %p172 = pneg %p171
    // Predicated region
    $region29: #{cross_attention.4} parent=5 // pred_check
      _
    $region30: #{cross_attention.4} parent=5 // pred_check_branch
      %174 = sbr.rel (%p171) target = $region32
    $region31: #{cross_attention.4} parent=5 // pred_region
      %s175 = ssub.s32 %s9, 1
      %s176 = smul.u32 2, %s18
      %p177 = scmp.lt.s32.totalorder %s176, 1
      %s178 = scalar_select %p177, %s176, 1
      %s179 = smul.addr %s178, 8
      %s180 = scalar_lea.vmem %s0, %s179
      %p181 = pneg %p47
      %p182 = pneg %p44
      %p183 = scmp.lt.s32.totalorder %s19, 3
      %s184 = scalar_select %p183, %s19, 3
      %s185 = smul.addr %s184, 4
      %s186 = smul.addr %s185, 8
      %s187 = scalar_lea.vmem %s1, %s186
      %p188 = pneg %p73
      %p189 = pneg %p70
      %p190 = scmp.lt.s32.totalorder %s19, 3
      %s191 = scalar_select %p190, %s19, 3
      %s192 = scalar_lea.vmem %s2, %s191
      %p193 = pneg %p99
      %p194 = pneg %p96
      %p195 = pneg %p127
      %p196 = pneg %p124
      %s197 = smul.u32 2, %s18
      %p198 = scmp.lt.s32.totalorder %s19, 3
      %s199 = scalar_select %p198, %s19, 3
      %p200 = scmp.lt.s32.totalorder %s197, 1
      %s201 = scalar_select %p200, %s197, 1
      %s202 = smul.addr %s199, 2
      %s203 = sadd.s32 %s201, %s202
      %s204 = smul.addr %s203, 8
      %s205 = scalar_lea.vmem %s3, %s204
      %s206 = smul.u32 2, %s18
      %p207 = scmp.lt.s32.totalorder %s206, 1
      %s208 = scalar_select %p207, %s206, 1
      %s209 = smul.addr %s208, 8
      %s210 = scalar_lea.vmem %s0, %s209
      %s211 = smul.u32 2, %s18
      %p212 = scmp.lt.s32.totalorder %s19, 3
      %s213 = scalar_select %p212, %s19, 3
      %s214 = smul.addr %s213, 4
      %s215 = smul.addr %s214, 8
      %s216 = scalar_lea.vmem %s1, %s215
      %p217 = scmp.lt.s32.totalorder %s19, 3
      %s218 = scalar_select %p217, %s19, 3
      %s219 = scalar_lea.vmem %s2, %s218
      %s220 = smul.u32 2, %s18
      %p221 = scmp.lt.s32.totalorder %s19, 3
      %s222 = scalar_select %p221, %s19, 3
      %p223 = scmp.lt.s32.totalorder %s220, 1
      %s224 = scalar_select %p223, %s220, 1
      %s225 = smul.addr %s222, 2
      %s226 = sadd.s32 %s224, %s225
      %s227 = smul.addr %s226, 8
      %s228 = scalar_lea.vmem %s3, %s227
      %s229 = smul.u32 2, %s18
      %v230 = vld [vmem:[%s210] sm:$0xff]
      %v231 = vld [vmem:[%s210 + $0x8] sm:$0xff]
      %v232 = vld [vmem:[%s216] sm:$0xff]
      %v233 = vld [vmem:[%s216 + $0x8] sm:$0xff]
      %v234 = vld [vmem:[%s216 + $0x10] sm:$0xff]
      %v235 = vld [vmem:[%s216 + $0x18] sm:$0xff]
      %v236 = vld [vmem:[%s219] sm:$0x1]
      %v238 = vlaneseq
      %v239 = vshrl.u32 %v238, 7
      %v240 = vsub.s32 0, %v239
      %v241 = vrot.slane %v236, %v240
      %vm243 = vcmask 261120
      %v245 = vsel %vm243, %v230, 0
      %v248 = vsel %vm243, %v231, 0
      %250 = vmatprep.subr.mxu0 0.0
      %251 = vmatpush1.msra.mxu0 %v232
      %252 = vmatprep.subr.mxu0 0.0
      %253 = vmatpush1.msra.mxu0 %v233
      %254 = vmatprep.subr.mxu0 0.0
      %255 = vmatpush1.msra.mxu0 %v234
      %256 = vmatprep.subr.mxu0 0.0
      %257 = vmatpush1.msra.mxu0 %v235
      %258 = vmatprep.subr.mxu0 0.0
      %259 = vmatpush1.msra.mxu0 0.0
      %260 = vmatprep.subr.mxu0 0.0
      %261 = vmatpush1.msra.mxu0 0.0
      %262 = vmatprep.subr.mxu0 0.0
      %263 = vmatpush1.msra.mxu0 0.0
      %264 = vmatprep.subr.mxu0 0.0
      %265 = vmatpush1.msra.mxu0 0.0
      %266 = vmatprep.subr.mxu0 0.0
      %267 = vmatpush1.msra.mxu0 0.0
      %268 = vmatprep.subr.mxu0 0.0
      %269 = vmatpush1.msra.mxu0 0.0
      %270 = vmatprep.subr.mxu0 0.0
      %271 = vmatpush1.msra.mxu0 0.0
      %272 = vmatprep.subr.mxu0 0.0
      %273 = vmatpush1.msra.mxu0 0.0
      %274 = vmatprep.subr.mxu0 0.0
      %275 = vmatpush1.msra.mxu0 0.0
      %276 = vmatprep.subr.mxu0 0.0
      %277 = vmatpush1.msra.mxu0 0.0
      %278 = vmatprep.subr.mxu0 0.0
      %279 = vmatpush1.msra.mxu0 0.0
      %280 = vmatprep.subr.mxu0 0.0
      %281 = vmatpush1.msra.mxu0 0.0
      %282 = vmatprep.subr.mxu0 0.0
      %283 = vmatpush1.msra.mxu0 0.0
      %284 = vmatprep.subr.mxu0 0.0
      %285 = vmatpush1.msra.mxu0 0.0
      %286 = vmatprep.subr.mxu0 0.0
      %287 = vmatpush1.msra.mxu0 0.0
      %288 = vmatprep.subr.mxu0 0.0
      %289 = vmatpush1.msra.mxu0 0.0
      %290 = vmatprep.subr.mxu0 0.0
      %291 = vmatpush1.msra.mxu0 0.0
      %292 = vmatprep.subr.mxu0 0.0
      %293 = vmatpush1.msra.mxu0 0.0
      %294 = vmatprep.subr.mxu0 0.0
      %295 = vmatpush1.msra.mxu0 0.0
      %296 = vmatprep.subr.mxu0 0.0
      %297 = vmatpush1.msra.mxu0 0.0
      %298 = vmatprep.subr.mxu0 0.0
      %299 = vmatpush1.msra.mxu0 0.0
      %300 = vmatprep.subr.mxu0 0.0
      %301 = vmatpush1.msra.mxu0 0.0
      %302 = vmatprep.subr.mxu0 0.0
      %303 = vmatpush1.msra.mxu0 0.0
      %304 = vmatprep.subr.mxu0 0.0
      %305 = vmatpush1.msra.mxu0 0.0
      %306 = vmatprep.subr.mxu0 0.0
      %307 = vmatpush1.msra.mxu0 0.0
      %308 = vmatprep.subr.mxu0 0.0
      %309 = vmatpush1.msra.mxu0 0.0
      %310 = vmatprep.subr.mxu0 0.0
      %311 = vmatpush1.msra.mxu0 0.0
      %312 = vmatprep.subr.mxu0 0.0
      %313 = vmatpush1.msra.mxu0 0.0
      %314 = vmatprep.mubr.f32.mxu0 0.0
      %315 = vmatmul.mubr.f32.gmra.mrb[0].mxu0 %v245
      %v316 = vpop.f32.mrb[0].mxu0
      %v317 = vadd.f32 %v241, %v316
      %v318 = vpop.f32.mrb[0].mxu0
      %319 = vmatprep.mubr.f32.mxu0 0.0
      %320 = vmatmul.mubr.f32.gmra.mrb[0].mxu0 %v248
      %v321 = vpop.f32.mrb[0].mxu0
      %v322 = vadd.f32 %v241, %v321
      %v323 = vpop.f32.mrb[0].mxu0
      %324 = vdwg.mxu0
      %vm325 = vcmask 64512
      %326 = vst.msk [vmem:[%s228] sm:$0xff] %vm325, %v317
      %327 = vst.msk [vmem:[%s228 + $0x8] sm:$0xff] %vm325, %v322
      %s328 = smul.u32 2, %s18
      %p329 = scmp.lt.s32.totalorder %s19, 3
      %s330 = scalar_select %p329, %s19, 3
      %p331 = scmp.lt.s32.totalorder %s328, 1
      %s332 = scalar_select %p331, %s328, 1
      %s333 = smul.addr %s330, 2
      %s334 = sadd.s32 %s332, %s333
      %s335 = smul.addr %s334, 8
      %s336 = scalar_lea.vmem %s3, %s335
      // Predicated region
      $region33: #{cross_attention.4} parent=31 // pred_check
        %p337 = pneg %p124
      $region34: #{cross_attention.4} parent=31 // pred_check_branch
        %339 = sbr.rel (%p337) target = $region36
      $region35: #{cross_attention.4} parent=31 // pred_region
        %s340 = smul.u32 2, %s18
      $region36: #{cross_attention.4} parent=31 // pred_fallthru
        _
    $region32: #{cross_attention.4} parent=5 // pred_fallthru
      _
    %p341 = scmp.le.s32.totalorder 2, %s9
    // Predicated region
    $region37: #{cross_attention.4} parent=5 // pred_check
      %p342 = pneg %p341
    $region38: #{cross_attention.4} parent=5 // pred_check_branch
      %344 = sbr.rel (%p342) target = $region40
    $region39: #{cross_attention.4} parent=5 // pred_region
      %s345 = ssub.s32 %s9, 2
      // Predicated region
      $region41: #{cross_attention.4} parent=39 // pred_check
        %p346 = pneg %p130
      $region42: #{cross_attention.4} parent=39 // pred_check_branch
        %348 = sbr.rel (%p346) target = $region44
      $region43: #{cross_attention.4} parent=39 // pred_region
        %s349 = smul.u32 2, %s20
        %p350 = scmp.lt.s32.totalorder %s21, 3
        %s351 = scalar_select %p350, %s21, 3
        %p352 = scmp.lt.s32.totalorder %s349, 1
        %s353 = scalar_select %p352, %s349, 1
        %s354 = smul.addr %s351, 2
        %s355 = sadd.s32 %s353, %s354
        %s356 = smul.addr %s355, 8
        %s357 = scalar_lea.vmem %s3, %s356
      $region44: #{cross_attention.4} parent=39 // pred_fallthru
        _
    $region40: #{cross_attention.4} parent=5 // pred_fallthru
      _
  $region6: #{cross_attention.4} parent=0 // loop_footer
    %s13 = sadd.s32 1, %s9
  $region7: #{cross_attention.4} parent=0 // loop_footer_branch
    %8 = sbr.rel target = $region3
  $region8: #{cross_attention.4} parent=0 // loop_exit
    _

// kernel: cross_attention.7
$region0: #{cross_attention.7}
  #allocation0 [shape = 'u32[]', space=smem, size = 0x4, offset = 0x4, fixed_abs, tag = 'smem constant byte address 0x4 - core index']
  #allocation1 [shape = 'u32[144,128]{1,0:T(1,128)}', space=vmem, size = 0x12000, scoped, tag = 'internal scratch']
  #allocation2 [shape = 'f32[8,32]{1,0:T(8,128)}', space=vmem, size = 0x1000, scoped, tag = 'scratch operand']
  %s0 = inlined_call_operand.vmem [shape: f32[4,2,8,8], index: 0, kind: input, shape index: {}]
  %s1 = inlined_call_operand.vmem [shape: f32[4,2,8,8], index: 1, kind: input, shape index: {}]
  %s2 = inlined_call_operand.vmem [shape: f32[4,2,8,8], index: 2, kind: input, shape index: {}]
  %s3 = inlined_call_operand.vmem [shape: f32[4,8,32], index: 3, kind: input, shape index: {}]
  %s4 = inlined_call_operand.vmem [shape: f32[1,32], index: 4, kind: input, shape index: {}]
  %s5 = inlined_call_operand.hbm [shape: f32[2,8,32], index: 5, kind: output, shape index: {}]
  %s6 = sld [smem:[#allocation0]]
  $region61: #{cross_attention.7} parent=0
    _
  %s8 = ssub.s32 1, %s6
  %s9 = scalar_select 0, %s8, %s6
  $region1: #{cross_attention.7} parent=0
    #allocation3 [shape = 'u8[8192]{0}', space=vmem, size = 0x2000, scoped, tag = 'output window, operand 0']
    #allocation4 [shape = 's32[2]{0}', space=sflag, size = 0x8, scoped, tag = 'scoped memory for cross_attention.7']
    %10 = vsyncpa [#allocation4], 0
    %s11 = scalar_lea.sflag [#allocation4], 1
    %12 = vsyncpa %s11, 0
    loop: start=0, step=1, limit=10
    $region2: #{cross_attention.7} parent=1 // loop_pre_header
      _
    $region3: #{cross_attention.7} parent=1 // loop_header
      %s14 = sphi 0, %s18
      %p15 = scmp.ge.s32.totalorder %s14, 10
      %s21 = sphi 0, %s40
      %s22 = sphi 0, %s36
      %s23 = sphi 0, %s32
      %s24 = sphi 0, %s21
      %s25 = sphi 0, %s22
      %s26 = sphi 0, %s23
      %s27 = sphi 0, %s24
      %s28 = sphi 0, %s25
      %s29 = sphi 0, %s26
      %s47 = sphi 0, %s49
      %s50 = sphi 0, %s47
      %s51 = sphi 0, %s50
      %s67 = sphi 0, %s51
      %s75 = sphi 0, %s77
      %s78 = sphi 0, %s75
      %s79 = sphi 0, %s78
      %s95 = sphi 0, %s79
      %s103 = sphi 0, %s105
      %s106 = sphi 0, %s103
      %s107 = sphi 0, %s106
      %s123 = sphi 0, %s107
      %s127 = sphi 0, %s127
      %s129 = sphi 0, %s127
      %s130 = sphi 0, %s129
      %s144 = sphi 0, %s130
      %s148 = sphi 0, %s148
      %s150 = sphi 0, %s148
      %s151 = sphi 0, %s150
      %s165 = sphi 0, %s151
      %s173 = sphi 0, %s175
      %s176 = sphi 0, %s173
      %s177 = sphi 0, %s176
      %s193 = sphi 0, %s177
    $region4: #{cross_attention.7} parent=1 // loop_header_branch
      %17 = sbr.rel (%p15) target = $region8
    $region5: #{cross_attention.7} parent=1 // loop_body
      %s19 = ssub.s32 %s14, 1
      %s20 = ssub.s32 %s14, 2
      %s30 = sadd.s32 1, %s23
      %p31 = scmp.ge.s32.totalorder %s30, 4
      %s32 = scalar_select %p31, 0, %s30
      %s33 = sadd.s32 1, %s22
      %s34 = scalar_select %p31, %s33, %s22
      %p35 = scmp.ge.s32.totalorder %s34, 1
      %s36 = scalar_select %p35, 0, %s34
      %s37 = sadd.s32 1, %s21
      %s38 = scalar_select %p35, %s37, %s21
      %p39 = scmp.ge.s32.totalorder %s38, 2
      %s40 = scalar_select %p39, 0, %s38
      %s41 = ssub.s32 %s23, %s32
      %s42 = ssub.s32 %s21, %s40
      %s43 = sor.u32 %s41, %s42
      %s44 = ssub.s32 %s22, %s36
      %s45 = sor.u32 %s43, %s44
      %p46 = scmp.eq.s32.totalorder %s45, 0
      %s48 = sadd.s32 %s47, 1
      %s49 = scalar_select %p46, %s47, %s48
      %p52 = pneg %p46
      %p53 = scmp.eq.s32.totalorder %s14, 7
      %p54 = por %p52, %p53
      %p55 = scmp.ne.s32.totalorder %s47, %s50
      %p56 = scmp.eq.s32.totalorder %s14, 0
      %p57 = por %p55, %p56
      %p58 = scmp.ne.s32.totalorder %s47, %s50
      %p59 = scmp.eq.s32.totalorder %s19, 7
      %p60 = por %p58, %p59
      %p61 = scmp.ne.s32.totalorder %s50, %s51
      %p62 = scmp.eq.s32.totalorder %s19, 0
      %p63 = por %p61, %p62
      %p64 = scmp.ne.s32.totalorder %s50, %s51
      %p65 = scmp.eq.s32.totalorder %s20, 7
      %p66 = por %p64, %p65
      %p68 = scmp.ne.s32.totalorder %s51, %s67
      %p69 = scmp.eq.s32.totalorder %s20, 0
      %p70 = por %p68, %p69
      %s71 = ssub.s32 %s23, %s32
      %s72 = ssub.s32 %s21, %s40
      %s73 = sor.u32 %s71, %s72
      %p74 = scmp.eq.s32.totalorder %s73, 0
      %s76 = sadd.s32 %s75, 1
      %s77 = scalar_select %p74, %s75, %s76
      %p80 = pneg %p74
      %p81 = scmp.eq.s32.totalorder %s14, 7
      %p82 = por %p80, %p81
      %p83 = scmp.ne.s32.totalorder %s75, %s78
      %p84 = scmp.eq.s32.totalorder %s14, 0
      %p85 = por %p83, %p84
      %p86 = scmp.ne.s32.totalorder %s75, %s78
      %p87 = scmp.eq.s32.totalorder %s19, 7
      %p88 = por %p86, %p87
      %p89 = scmp.ne.s32.totalorder %s78, %s79
      %p90 = scmp.eq.s32.totalorder %s19, 0
      %p91 = por %p89, %p90
      %p92 = scmp.ne.s32.totalorder %s78, %s79
      %p93 = scmp.eq.s32.totalorder %s20, 7
      %p94 = por %p92, %p93
      %p96 = scmp.ne.s32.totalorder %s79, %s95
      %p97 = scmp.eq.s32.totalorder %s20, 0
      %p98 = por %p96, %p97
      %s99 = ssub.s32 %s23, %s32
      %s100 = ssub.s32 %s21, %s40
      %s101 = sor.u32 %s99, %s100
      %p102 = scmp.eq.s32.totalorder %s101, 0
      %s104 = sadd.s32 %s103, 1
      %s105 = scalar_select %p102, %s103, %s104
      %p108 = pneg %p102
      %p109 = scmp.eq.s32.totalorder %s14, 7
      %p110 = por %p108, %p109
      %p111 = scmp.ne.s32.totalorder %s103, %s106
      %p112 = scmp.eq.s32.totalorder %s14, 0
      %p113 = por %p111, %p112
      %p114 = scmp.ne.s32.totalorder %s103, %s106
      %p115 = scmp.eq.s32.totalorder %s19, 7
      %p116 = por %p114, %p115
      %p117 = scmp.ne.s32.totalorder %s106, %s107
      %p118 = scmp.eq.s32.totalorder %s19, 0
      %p119 = por %p117, %p118
      %p120 = scmp.ne.s32.totalorder %s106, %s107
      %p121 = scmp.eq.s32.totalorder %s20, 7
      %p122 = por %p120, %p121
      %p124 = scmp.ne.s32.totalorder %s107, %s123
      %p125 = scmp.eq.s32.totalorder %s20, 0
      %p126 = por %p124, %p125
      %s128 = sadd.s32 %s127, 1
      %p131 = scmp.eq.s32.totalorder %s14, 7
      %p132 = scmp.ne.s32.totalorder %s127, %s129
      %p133 = scmp.eq.s32.totalorder %s14, 0
      %p134 = por %p132, %p133
      %p135 = scmp.ne.s32.totalorder %s127, %s129
      %p136 = scmp.eq.s32.totalorder %s19, 7
      %p137 = por %p135, %p136
      %p138 = scmp.ne.s32.totalorder %s129, %s130
      %p139 = scmp.eq.s32.totalorder %s19, 0
      %p140 = por %p138, %p139
      %p141 = scmp.ne.s32.totalorder %s129, %s130
      %p142 = scmp.eq.s32.totalorder %s20, 7
      %p143 = por %p141, %p142
      %p145 = scmp.ne.s32.totalorder %s130, %s144
      %p146 = scmp.eq.s32.totalorder %s20, 0
      %p147 = por %p145, %p146
      %s149 = sadd.s32 %s148, 1
      %p152 = scmp.eq.s32.totalorder %s14, 7
      %p153 = scmp.ne.s32.totalorder %s148, %s150
      %p154 = scmp.eq.s32.totalorder %s14, 0
      %p155 = por %p153, %p154
      %p156 = scmp.ne.s32.totalorder %s148, %s150
      %p157 = scmp.eq.s32.totalorder %s19, 7
      %p158 = por %p156, %p157
      %p159 = scmp.ne.s32.totalorder %s150, %s151
      %p160 = scmp.eq.s32.totalorder %s19, 0
      %p161 = por %p159, %p160
      %p162 = scmp.ne.s32.totalorder %s150, %s151
      %p163 = scmp.eq.s32.totalorder %s20, 7
      %p164 = por %p162, %p163
      %p166 = scmp.ne.s32.totalorder %s151, %s165
      %p167 = scmp.eq.s32.totalorder %s20, 0
      %p168 = por %p166, %p167
      %s169 = ssub.s32 %s21, %s40
      %s170 = ssub.s32 %s22, %s36
      %s171 = sor.u32 %s169, %s170
      %p172 = scmp.eq.s32.totalorder %s171, 0
      %s174 = sadd.s32 %s173, 1
      %s175 = scalar_select %p172, %s173, %s174
      %p178 = pneg %p172
      %p179 = scmp.eq.s32.totalorder %s14, 7
      %p180 = por %p178, %p179
      %p181 = scmp.ne.s32.totalorder %s173, %s176
      %p182 = scmp.eq.s32.totalorder %s14, 0
      %p183 = por %p181, %p182
      %p184 = scmp.ne.s32.totalorder %s173, %s176
      %p185 = scmp.eq.s32.totalorder %s19, 7
      %p186 = por %p184, %p185
      %p187 = scmp.ne.s32.totalorder %s176, %s177
      %p188 = scmp.eq.s32.totalorder %s19, 0
      %p189 = por %p187, %p188
      %p190 = scmp.ne.s32.totalorder %s176, %s177
      %p191 = scmp.eq.s32.totalorder %s20, 7
      %p192 = por %p190, %p191
      %p194 = scmp.ne.s32.totalorder %s177, %s193
      %p195 = scmp.eq.s32.totalorder %s20, 0
      %p196 = por %p194, %p195
      %p197 = scmp.le.s32.totalorder 1, %s14
      %p198 = scmp.lt.s32.totalorder %s14, 9
      %p199 = pnand %p197, %p198
      %p200 = pneg %p199
      // Predicated region
      $region9: #{cross_attention.7} parent=5 // pred_check
        _
      $region10: #{cross_attention.7} parent=5 // pred_check_branch
        %202 = sbr.rel (%p199) target = $region12
      $region11: #{cross_attention.7} parent=5 // pred_region
        %s203 = ssub.s32 %s14, 1
        // Predicated region
        $region13: #{cross_attention.7} parent=11 // pred_check
          %p204 = pneg %p140
        $region14: #{cross_attention.7} parent=11 // pred_check_branch
          %206 = sbr.rel (%p204) target = $region16
        $region15: #{cross_attention.7} parent=11 // pred_region
          _
        $region16: #{cross_attention.7} parent=11 // pred_fallthru
          _
        // Predicated region
        $region17: #{cross_attention.7} parent=11 // pred_check
          %p207 = pneg %p161
        $region18: #{cross_attention.7} parent=11 // pred_check_branch
          %209 = sbr.rel (%p207) target = $region20
        $region19: #{cross_attention.7} parent=11 // pred_region
          _
        $region20: #{cross_attention.7} parent=11 // pred_fallthru
          _
      $region12: #{cross_attention.7} parent=5 // pred_fallthru
        _
      %p210 = scmp.lt.s32.totalorder %s14, 8
      // Predicated region
      $region21: #{cross_attention.7} parent=5 // pred_check
        %p211 = pneg %p210
      $region22: #{cross_attention.7} parent=5 // pred_check_branch
        %213 = sbr.rel (%p211) target = $region24
      $region23: #{cross_attention.7} parent=5 // pred_region
        // Predicated region
        $region25: #{cross_attention.7} parent=23 // pred_check
          %p214 = pneg %p57
        $region26: #{cross_attention.7} parent=23 // pred_check_branch
          %216 = sbr.rel (%p214) target = $region28
        $region27: #{cross_attention.7} parent=23 // pred_region
          %p217 = scmp.lt.s32.totalorder %s23, 3
          %s218 = scalar_select %p217, %s23, 3
          %p219 = scmp.lt.s32.totalorder %s21, 1
          %s220 = scalar_select %p219, %s21, 1
          %p221 = scmp.lt.s32.totalorder %s22, 0
          %s222 = scalar_select %p221, %s22, 0
          %s223 = sadd.s32 %s222, %s220
          %s224 = smul.addr %s218, 2
          %s225 = sadd.s32 %s223, %s224
          %s226 = smul.addr %s225, 8
          %s227 = scalar_lea.vmem %s0, %s226
        $region28: #{cross_attention.7} parent=23 // pred_fallthru
          _
        // Predicated region
        $region29: #{cross_attention.7} parent=23 // pred_check
          %p228 = pneg %p85
        $region30: #{cross_attention.7} parent=23 // pred_check_branch
          %230 = sbr.rel (%p228) target = $region32
        $region31: #{cross_attention.7} parent=23 // pred_region
          %p231 = scmp.lt.s32.totalorder %s23, 3
          %s232 = scalar_select %p231, %s23, 3
          %p233 = scmp.lt.s32.totalorder %s21, 1
          %s234 = scalar_select %p233, %s21, 1
          %s235 = smul.addr %s232, 2
          %s236 = sadd.s32 %s234, %s235
          %s237 = smul.addr %s236, 8
          %s238 = scalar_lea.vmem %s1, %s237
        $region32: #{cross_attention.7} parent=23 // pred_fallthru
          _
        // Predicated region
        $region33: #{cross_attention.7} parent=23 // pred_check
          %p239 = pneg %p113
        $region34: #{cross_attention.7} parent=23 // pred_check_branch
          %241 = sbr.rel (%p239) target = $region36
        $region35: #{cross_attention.7} parent=23 // pred_region
          %p242 = scmp.lt.s32.totalorder %s23, 3
          %s243 = scalar_select %p242, %s23, 3
          %p244 = scmp.lt.s32.totalorder %s21, 1
          %s245 = scalar_select %p244, %s21, 1
          %s246 = smul.addr %s243, 2
          %s247 = sadd.s32 %s245, %s246
          %s248 = smul.addr %s247, 8
          %s249 = scalar_lea.vmem %s2, %s248
        $region36: #{cross_attention.7} parent=23 // pred_fallthru
          _
      $region24: #{cross_attention.7} parent=5 // pred_fallthru
        _
      %p250 = scmp.le.s32.totalorder 1, %s14
      %p251 = scmp.lt.s32.totalorder %s14, 9
      %p252 = pnand %p250, %p251
      %p253 = pneg %p252
      // Predicated region
      $region37: #{cross_attention.7} parent=5 // pred_check
        _
      $region38: #{cross_attention.7} parent=5 // pred_check_branch
        %255 = sbr.rel (%p252) target = $region40
      $region39: #{cross_attention.7} parent=5 // pred_region
        %s256 = ssub.s32 %s14, 1
        %p257 = scmp.lt.s32.totalorder %s26, 3
        %s258 = scalar_select %p257, %s26, 3
        %p259 = scmp.lt.s32.totalorder %s24, 1
        %s260 = scalar_select %p259, %s24, 1
        %p261 = scmp.lt.s32.totalorder %s25, 0
        %s262 = scalar_select %p261, %s25, 0
        %s263 = sadd.s32 %s262, %s260
        %s264 = smul.addr %s258, 2
        %s265 = sadd.s32 %s263, %s264
        %s266 = smul.addr %s265, 8
        %s267 = scalar_lea.vmem %s0, %s266
        %p268 = pneg %p63
        %p269 = pneg %p60
        %p270 = scmp.lt.s32.totalorder %s26, 3
        %s271 = scalar_select %p270, %s26, 3
        %p272 = scmp.lt.s32.totalorder %s24, 1
        %s273 = scalar_select %p272, %s24, 1
        %s274 = smul.addr %s271, 2
        %s275 = sadd.s32 %s273, %s274
        %s276 = smul.addr %s275, 8
        %s277 = scalar_lea.vmem %s1, %s276
        %p278 = pneg %p91
        %p279 = pneg %p88
        %p280 = scmp.lt.s32.totalorder %s26, 3
        %s281 = scalar_select %p280, %s26, 3
        %p282 = scmp.lt.s32.totalorder %s24, 1
        %s283 = scalar_select %p282, %s24, 1
        %s284 = smul.addr %s281, 2
        %s285 = sadd.s32 %s283, %s284
        %s286 = smul.addr %s285, 8
        %s287 = scalar_lea.vmem %s2, %s286
        %p288 = pneg %p119
        %p289 = pneg %p116
        %p290 = pneg %p140
        %p291 = pneg %p137
        %p292 = pneg %p161
        %p293 = pneg %p158
        %p294 = pneg %p189
        %p295 = pneg %p186
        %s296 = sand.u32 %s176, 1
        %s297 = scalar_lea.sflag [#allocation4], %s296
        %s298 = sand.u32 %s176, 1
        %s299 = smul.addr %s298, 8
        %s300 = scalar_lea.vmem [#allocation3], %s299
        %p301 = scmp.lt.s32.totalorder %s26, 3
        %s302 = scalar_select %p301, %s26, 3
        %p303 = scmp.lt.s32.totalorder %s24, 1
        %s304 = scalar_select %p303, %s24, 1
        %p305 = scmp.lt.s32.totalorder %s25, 0
        %s306 = scalar_select %p305, %s25, 0
        %s307 = sadd.s32 %s306, %s304
        %s308 = smul.addr %s302, 2
        %s309 = sadd.s32 %s307, %s308
        %s310 = smul.addr %s309, 8
        %s311 = scalar_lea.vmem %s0, %s310
        %p312 = scmp.lt.s32.totalorder %s26, 3
        %s313 = scalar_select %p312, %s26, 3
        %p314 = scmp.lt.s32.totalorder %s24, 1
        %s315 = scalar_select %p314, %s24, 1
        %s316 = smul.addr %s313, 2
        %s317 = sadd.s32 %s315, %s316
        %s318 = smul.addr %s317, 8
        %s319 = scalar_lea.vmem %s1, %s318
        %p320 = scmp.lt.s32.totalorder %s26, 3
        %s321 = scalar_select %p320, %s26, 3
        %p322 = scmp.lt.s32.totalorder %s24, 1
        %s323 = scalar_select %p322, %s24, 1
        %s324 = smul.addr %s321, 2
        %s325 = sadd.s32 %s323, %s324
        %s326 = smul.addr %s325, 8
        %s327 = scalar_lea.vmem %s2, %s326
        %p328 = scmp.eq.s32.totalorder %s26, 0
        // Predicated region
        $region41: #{cross_attention.7} parent=39 // pred_check
          %p329 = pneg %p328
        $region42: #{cross_attention.7} parent=39 // pred_check_branch
          %331 = sbr.rel (%p329) target = $region44
        $region43: #{cross_attention.7} parent=39 // pred_region
          %vm332 = vcmask 261120
          %333 = vst.msk [vmem:[#allocation2] sm:$0xff] %vm332, 0.0
        $region44: #{cross_attention.7} parent=39 // pred_fallthru
          _
        %v334 = vld [vmem:[%s311] sm:$0xff]
        %v335 = vld [vmem:[%s319] sm:$0xff]
        %v336 = vld [vmem:[%s327] sm:$0xff]
        %vm337 = vcmask 64512
        %v339 = vsel %vm337, %v334, 0
        %v342 = vsel %vm337, %v335, 0
        %344 = vmatprep.subr.mxu0 0.0
        %345 = vmatpush1.xpose.msra.mxu0 %v342
        %346 = vmatprep.subr.mxu0 0.0
        %347 = vmatpush1.xpose.msra.mxu0 0.0
        %348 = vmatprep.subr.mxu0 0.0
        %349 = vmatpush1.xpose.msra.mxu0 0.0
        %350 = vmatprep.subr.mxu0 0.0
        %351 = vmatpush1.xpose.msra.mxu0 0.0
        %352 = vmatprep.subr.mxu0 0.0
        %353 = vmatpush1.xpose.msra.mxu0 0.0
        %354 = vmatprep.subr.mxu0 0.0
        %355 = vmatpush1.xpose.msra.mxu0 0.0
        %356 = vmatprep.subr.mxu0 0.0
        %357 = vmatpush1.xpose.msra.mxu0 0.0
        %358 = vmatprep.subr.mxu0 0.0
        %359 = vmatpush1.xpose.msra.mxu0 0.0
        %360 = vmatprep.subr.mxu0 0.0
        %361 = vmatpush1.xpose.msra.mxu0 0.0
        %362 = vmatprep.subr.mxu0 0.0
        %363 = vmatpush1.xpose.msra.mxu0 0.0
        %364 = vmatprep.subr.mxu0 0.0
        %365 = vmatpush1.xpose.msra.mxu0 0.0
        %366 = vmatprep.subr.mxu0 0.0
        %367 = vmatpush1.xpose.msra.mxu0 0.0
        %368 = vmatprep.subr.mxu0 0.0
        %369 = vmatpush1.xpose.msra.mxu0 0.0
        %370 = vmatprep.subr.mxu0 0.0
        %371 = vmatpush1.xpose.msra.mxu0 0.0
        %372 = vmatprep.subr.mxu0 0.0
        %373 = vmatpush1.xpose.msra.mxu0 0.0
        %374 = vmatprep.subr.mxu0 0.0
        %375 = vmatpush1.xpose.msra.mxu0 0.0
        %376 = vmatprep.subr.mxu0 0.0
        %377 = vmatpush1.xpose.msra.mxu0 0.0
        %378 = vmatprep.subr.mxu0 0.0
        %379 = vmatpush1.xpose.msra.mxu0 0.0
        %380 = vmatprep.subr.mxu0 0.0
        %381 = vmatpush1.xpose.msra.mxu0 0.0
        %382 = vmatprep.subr.mxu0 0.0
        %383 = vmatpush1.xpose.msra.mxu0 0.0
        %384 = vmatprep.subr.mxu0 0.0
        %385 = vmatpush1.xpose.msra.mxu0 0.0
        %386 = vmatprep.subr.mxu0 0.0
        %387 = vmatpush1.xpose.msra.mxu0 0.0
        %388 = vmatprep.subr.mxu0 0.0
        %389 = vmatpush1.xpose.msra.mxu0 0.0
        %390 = vmatprep.subr.mxu0 0.0
        %391 = vmatpush1.xpose.msra.mxu0 0.0
        %392 = vmatprep.subr.mxu0 0.0
        %393 = vmatpush1.xpose.msra.mxu0 0.0
        %394 = vmatprep.subr.mxu0 0.0
        %395 = vmatpush1.xpose.msra.mxu0 0.0
        %396 = vmatprep.subr.mxu0 0.0
        %397 = vmatpush1.xpose.msra.mxu0 0.0
        %398 = vmatprep.subr.mxu0 0.0
        %399 = vmatpush1.xpose.msra.mxu0 0.0
        %400 = vmatprep.subr.mxu0 0.0
        %401 = vmatpush1.xpose.msra.mxu0 0.0
        %402 = vmatprep.subr.mxu0 0.0
        %403 = vmatpush1.xpose.msra.mxu0 0.0
        %404 = vmatprep.subr.mxu0 0.0
        %405 = vmatpush1.xpose.msra.mxu0 0.0
        %406 = vmatprep.subr.mxu0 0.0
        %407 = vmatpush1.xpose.msra.mxu0 0.0
        %408 = vmatprep.mubr.f32.mxu0 0.0
        %409 = vmatmul.mubr.f32.gmra.mrb[0].mxu0 %v339
        %v410 = vpop.f32.mrb[0].mxu0
        %v411 = vadd.f32 0.0, %v410
        %v412 = vpop.f32.mrb[0].mxu0
        %413 = vdwg.mxu0
        %v414 = vsel %vm337, %v411, -inf
        %415 = vmax.xlane.f32.xlu0 %v414
        %v416 = vpop.xlane.xlu0 %415
        %v417 = vsub.f32 %v411, %v416
        %v418 = vmul.f32 %v417, 1.442695
        %v419 = vpow.pop %v418
        %v420 = vsel %vm337, %v419, 0.0
        %421 = vadd.xlane.f32.xlu0 %v420
        %v422 = vpop.xlane.xlu0 %421
        %v424 = vsel %vm337, %v419, 0
        %426 = vmatprep.subr.mxu0 0.0
        %427 = vmatpush1.msra.mxu0 %v336
        %428 = vmatprep.subr.mxu0 0.0
        %429 = vmatpush1.msra.mxu0 0.0
        %430 = vmatprep.subr.mxu0 0.0
        %431 = vmatpush1.msra.mxu0 0.0
        %432 = vmatprep.subr.mxu0 0.0
        %433 = vmatpush1.msra.mxu0 0.0
        %434 = vmatprep.subr.mxu0 0.0
        %435 = vmatpush1.msra.mxu0 0.0
        %436 = vmatprep.subr.mxu0 0.0
        %437 = vmatpush1.msra.mxu0 0.0
        %438 = vmatprep.subr.mxu0 0.0
        %439 = vmatpush1.msra.mxu0 0.0
        %440 = vmatprep.subr.mxu0 0.0
        %441 = vmatpush1.msra.mxu0 0.0
        %442 = vmatprep.subr.mxu0 0.0
        %443 = vmatpush1.msra.mxu0 0.0
        %444 = vmatprep.subr.mxu0 0.0
        %445 = vmatpush1.msra.mxu0 0.0
        %446 = vmatprep.subr.mxu0 0.0
        %447 = vmatpush1.msra.mxu0 0.0
        %448 = vmatprep.subr.mxu0 0.0
        %449 = vmatpush1.msra.mxu0 0.0
        %450 = vmatprep.subr.mxu0 0.0
        %451 = vmatpush1.msra.mxu0 0.0
        %452 = vmatprep.subr.mxu0 0.0
        %453 = vmatpush1.msra.mxu0 0.0
        %454 = vmatprep.subr.mxu0 0.0
        %455 = vmatpush1.msra.mxu0 0.0
        %456 = vmatprep.subr.mxu0 0.0
        %457 = vmatpush1.msra.mxu0 0.0
        %458 = vmatprep.subr.mxu0 0.0
        %459 = vmatpush1.msra.mxu0 0.0
        %460 = vmatprep.subr.mxu0 0.0
        %461 = vmatpush1.msra.mxu0 0.0
        %462 = vmatprep.subr.mxu0 0.0
        %463 = vmatpush1.msra.mxu0 0.0
        %464 = vmatprep.subr.mxu0 0.0
        %465 = vmatpush1.msra.mxu0 0.0
        %466 = vmatprep.subr.mxu0 0.0
        %467 = vmatpush1.msra.mxu0 0.0
        %468 = vmatprep.subr.mxu0 0.0
        %469 = vmatpush1.msra.mxu0 0.0
        %470 = vmatprep.subr.mxu0 0.0
        %471 = vmatpush1.msra.mxu0 0.0
        %472 = vmatprep.subr.mxu0 0.0
        %473 = vmatpush1.msra.mxu0 0.0
        %474 = vmatprep.subr.mxu0 0.0
        %475 = vmatpush1.msra.mxu0 0.0
        %476 = vmatprep.subr.mxu0 0.0
        %477 = vmatpush1.msra.mxu0 0.0
        %478 = vmatprep.subr.mxu0 0.0
        %479 = vmatpush1.msra.mxu0 0.0
        %480 = vmatprep.subr.mxu0 0.0
        %481 = vmatpush1.msra.mxu0 0.0
        %482 = vmatprep.subr.mxu0 0.0
        %483 = vmatpush1.msra.mxu0 0.0
        %484 = vmatprep.subr.mxu0 0.0
        %485 = vmatpush1.msra.mxu0 0.0
        %486 = vmatprep.subr.mxu0 0.0
        %487 = vmatpush1.msra.mxu0 0.0
        %488 = vmatprep.subr.mxu0 0.0
        %489 = vmatpush1.msra.mxu0 0.0
        %490 = vmatprep.mubr.f32.mxu0 0.0
        %491 = vmatmul.mubr.f32.gmra.mrb[0].mxu0 %v424
        %v492 = vpop.f32.mrb[0].mxu0
        %v493 = vadd.f32 0.0, %v492
        %v494 = vpop.f32.mrb[0].mxu0
        %495 = vdwg.mxu0
        %v496 = vrcp.pop %v422
        %v497 = vmul.f32 %v493, %v496
        %s498 = smul.u32 %s26, 8
        %s499 = scalar_lea.vmem %s3, %s498
        %v500 = vld [vmem:[%s499] sm:$0xff]
        %v501 = vld [vmem:[#allocation2] sm:$0xff]
        %v503 = vsel %vm337, %v497, 0
        %505 = vmatprep.subr.mxu0 0.0
        %506 = vmatpush1.msra.mxu0 %v500
        %507 = vmatprep.subr.mxu0 0.0
        %508 = vmatpush1.msra.mxu0 0.0
        %509 = vmatprep.subr.mxu0 0.0
        %510 = vmatpush1.msra.mxu0 0.0
        %511 = vmatprep.subr.mxu0 0.0
        %512 = vmatpush1.msra.mxu0 0.0
        %513 = vmatprep.subr.mxu0 0.0
        %514 = vmatpush1.msra.mxu0 0.0
        %515 = vmatprep.subr.mxu0 0.0
        %516 = vmatpush1.msra.mxu0 0.0
        %517 = vmatprep.subr.mxu0 0.0
        %518 = vmatpush1.msra.mxu0 0.0
        %519 = vmatprep.subr.mxu0 0.0
        %520 = vmatpush1.msra.mxu0 0.0
        %521 = vmatprep.subr.mxu0 0.0
        %522 = vmatpush1.msra.mxu0 0.0
        %523 = vmatprep.subr.mxu0 0.0
        %524 = vmatpush1.msra.mxu0 0.0
        %525 = vmatprep.subr.mxu0 0.0
        %526 = vmatpush1.msra.mxu0 0.0
        %527 = vmatprep.subr.mxu0 0.0
        %528 = vmatpush1.msra.mxu0 0.0
        %529 = vmatprep.subr.mxu0 0.0
        %530 = vmatpush1.msra.mxu0 0.0
        %531 = vmatprep.subr.mxu0 0.0
        %532 = vmatpush1.msra.mxu0 0.0
        %533 = vmatprep.subr.mxu0 0.0
        %534 = vmatpush1.msra.mxu0 0.0
        %535 = vmatprep.subr.mxu0 0.0
        %536 = vmatpush1.msra.mxu0 0.0
        %537 = vmatprep.subr.mxu0 0.0
        %538 = vmatpush1.msra.mxu0 0.0
        %539 = vmatprep.subr.mxu0 0.0
        %540 = vmatpush1.msra.mxu0 0.0
        %541 = vmatprep.subr.mxu0 0.0
        %542 = vmatpush1.msra.mxu0 0.0
        %543 = vmatprep.subr.mxu0 0.0
        %544 = vmatpush1.msra.mxu0 0.0
        %545 = vmatprep.subr.mxu0 0.0
        %546 = vmatpush1.msra.mxu0 0.0
        %547 = vmatprep.subr.mxu0 0.0
        %548 = vmatpush1.msra.mxu0 0.0
        %549 = vmatprep.subr.mxu0 0.0
        %550 = vmatpush1.msra.mxu0 0.0
        %551 = vmatprep.subr.mxu0 0.0
        %552 = vmatpush1.msra.mxu0 0.0
        %553 = vmatprep.subr.mxu0 0.0
        %554 = vmatpush1.msra.mxu0 0.0
        %555 = vmatprep.subr.mxu0 0.0
        %556 = vmatpush1.msra.mxu0 0.0
        %557 = vmatprep.subr.mxu0 0.0
        %558 = vmatpush1.msra.mxu0 0.0
        %559 = vmatprep.subr.mxu0 0.0
        %560 = vmatpush1.msra.mxu0 0.0
        %561 = vmatprep.subr.mxu0 0.0
        %562 = vmatpush1.msra.mxu0 0.0
        %563 = vmatprep.subr.mxu0 0.0
        %564 = vmatpush1.msra.mxu0 0.0
        %565 = vmatprep.subr.mxu0 0.0
        %566 = vmatpush1.msra.mxu0 0.0
        %567 = vmatprep.subr.mxu0 0.0
        %568 = vmatpush1.msra.mxu0 0.0
        %569 = vmatprep.mubr.f32.mxu0 0.0
        %570 = vmatmul.mubr.f32.gmra.mrb[0].mxu0 %v503
        %v571 = vpop.f32.mrb[0].mxu0
        %v572 = vadd.f32 0.0, %v571
        %v573 = vpop.f32.mrb[0].mxu0
        %574 = vdwg.mxu0
        %v575 = vadd.f32 %v501, %v572
        %vm576 = vcmask 261120
        %577 = vst.msk [vmem:[#allocation2] sm:$0xff] %vm576, %v575
        %p578 = scmp.eq.s32.totalorder %s26, 3
        // Predicated region
        $region45: #{cross_attention.7} parent=39 // pred_check
          %p579 = pneg %p578
        $region46: #{cross_attention.7} parent=39 // pred_check_branch
          %581 = sbr.rel (%p579) target = $region48
        $region47: #{cross_attention.7} parent=39 // pred_region
          %v582 = vld [vmem:[#allocation2] sm:$0xff]
          %v583 = vld [vmem:[%s4] sm:$0x1]
          %v585 = vlaneseq
          %v586 = vshrl.u32 %v585, 7
          %v587 = vsub.s32 0, %v586
          %v588 = vrot.slane %v583, %v587
          %v590 = vadd.f32 %v582, %v588
          %591 = vst.msk [vmem:[%s300] sm:$0xff] %vm576, %v590
        $region48: #{cross_attention.7} parent=39 // pred_fallthru
          _
        %s592 = sand.u32 %s176, 1
        %s593 = scalar_lea.sflag [#allocation4], %s592
        %s594 = sand.u32 %s176, 1
        %s595 = smul.addr %s594, 8
        %s596 = scalar_lea.vmem [#allocation3], %s595
        // Predicated region
        $region49: #{cross_attention.7} parent=39 // pred_check
          %p597 = pneg %p186
        $region50: #{cross_attention.7} parent=39 // pred_check_branch
          %599 = sbr.rel (%p597) target = $region52
        $region51: #{cross_attention.7} parent=39 // pred_region
          %s601 = ssub.s32 128, 128
          %602 = vsyncadd %s593, %s601
          %s603 = sadd.s32 %s25, %s24
          %s604 = smul.addr %s603, 128
          %s605 = scalar_lea.hbm %s5, %s604
          %s607 = sshll.u32 %s596, 4
          %s608 = int_to_ptr.vmem [resolvable:$true] %s607
          %610 = dma.vmem_to_hbm [thread:$0]  %s608, 128, %s605, %s593
        $region52: #{cross_attention.7} parent=39 // pred_fallthru
          _
      $region40: #{cross_attention.7} parent=5 // pred_fallthru
        _
      %p611 = scmp.le.s32.totalorder 2, %s14
      // Predicated region
      $region53: #{cross_attention.7} parent=5 // pred_check
        %p612 = pneg %p611
      $region54: #{cross_attention.7} parent=5 // pred_check_branch
        %614 = sbr.rel (%p612) target = $region56
      $region55: #{cross_attention.7} parent=5 // pred_region
        %s615 = ssub.s32 %s14, 2
        // Predicated region
        $region57: #{cross_attention.7} parent=55 // pred_check
          %p616 = pneg %p192
        $region58: #{cross_attention.7} parent=55 // pred_check_branch
          %618 = sbr.rel (%p616) target = $region60
        $region59: #{cross_attention.7} parent=55 // pred_region
          %s619 = sand.u32 %s177, 1
          %s620 = scalar_lea.sflag [#allocation4], %s619
          %s621 = sand.u32 %s177, 1
          %s622 = smul.addr %s621, 8
          %s623 = scalar_lea.vmem [#allocation3], %s622
          %624 = dma.done %s620, 128
        $region60: #{cross_attention.7} parent=55 // pred_fallthru
          _
      $region56: #{cross_attention.7} parent=5 // pred_fallthru
        _
    $region6: #{cross_attention.7} parent=1 // loop_footer
      %s18 = sadd.s32 1, %s14
    $region7: #{cross_attention.7} parent=1 // loop_footer_branch
      %13 = sbr.rel target = $region3
    $region8: #{cross_attention.7} parent=1 // loop_exit
      _
    %625 = vsyncpa [#allocation4], 1
    %s626 = scalar_lea.sflag [#allocation4], 1
    %627 = vsyncpa %s626, 1

</llo_original>
